<compile_context>
chip_gen: v5e
topology: v5e:2x2
jax: 0.10.0
libtpu: 0.0.40
codegen_flags: <defaults>
</compile_context>

<pallas_src>
import functools

import jax
import jax.numpy as jnp
from jax.experimental import pallas as pl
from jax.experimental.pallas import tpu as pltpu


def _linear_kernel(x_ref, w_ref, b_ref, o_ref, *, precision):
    # x_ref: (tile, K)  w_ref: (K, N)  b_ref: (1, N) f32  o_ref: (tile, N)
    acc = jnp.dot(
        x_ref[...],
        w_ref[...],
        preferred_element_type=jnp.float32,
        precision=precision,
    )
    o_ref[...] = (acc + b_ref[...]).astype(o_ref.dtype)


def _round_up(v, m):
    return ((v + m - 1) // m) * m


def sift_encoder_forward(
    x,
    weight_t,
    bias,
    *,
    tm=1024,
    compute_dtype=jnp.bfloat16,
    out_dtype=None,
):
    """y = x @ weight_t + bias over the last dim of x.

    x:             (..., input_dim)
    weight_t:      (input_dim, bottleneck_dim)   (transposed torch weight)
    bias:          (bottleneck_dim,)
    tm:            max row tile.  1024-2048 is good on v7x (bigger amortizes the
                   ~0.35us/step overhead at 3.2 TB/s), 512-1024 on v5e/v6e.
    compute_dtype: dtype x and weight_t are cast to before the MXU.  bf16
                   (default) halves HBM traffic for the mem-bound kernel;
                   pass jnp.float32 for exact torch-fp32 parity (the dot then
                   runs with precision=HIGHEST, which is ~free here).
    out_dtype:     output dtype; defaults to x.dtype.
    """
    orig_shape = x.shape
    K = orig_shape[-1]
    N = weight_t.shape[-1]
    out_dtype = jnp.dtype(out_dtype) if out_dtype is not None else x.dtype
    compute_dtype = jnp.dtype(compute_dtype)

    x2d = x.reshape(-1, K)
    M = x2d.shape[0]

    if x2d.dtype != compute_dtype:
        x2d = x2d.astype(compute_dtype)
    w = weight_t if weight_t.dtype == compute_dtype else weight_t.astype(compute_dtype)
    bias2d = bias.astype(jnp.float32).reshape(1, N)  # bias / accum stay f32 (v5e).

    # Full fp32 parity only matters on the f32 path; it is cheap there because
    # the kernel is HBM-bound, not MXU-bound.
    precision = (
        jax.lax.Precision.HIGHEST
        if compute_dtype == jnp.dtype(jnp.float32)
        else jax.lax.Precision.DEFAULT
    )

    # Row-tile selection:
    #  * even split into the fewest tiles of size <= tm (rounded up to 8 rows),
    #    instead of padding M up to a full tile;
    #  * force >= 2 grid steps whenever possible so ("parallel",) can engage
    #    both v7x TensorCores;
    #  * the last partial tile is handled by Pallas ragged-boundary masking
    #    (no wrapper pad / slice).
    M8 = _round_up(max(M, 1), 8)
    nsteps = pl.cdiv(M8, tm)
    if nsteps < 2 and M8 >= 16:
        nsteps = 2
    tile = _round_up(pl.cdiv(M8, nsteps), 8)
    grid = (pl.cdiv(M, tile),)

    cost = pl.CostEstimate(
        flops=2 * M * K * N,
        transcendentals=0,
        bytes_accessed=(
            M * K * x2d.dtype.itemsize
            + K * N * w.dtype.itemsize
            + N * 4
            + M * N * out_dtype.itemsize
        ),
    )

    out = pl.pallas_call(
        functools.partial(_linear_kernel, precision=precision),
        out_shape=jax.ShapeDtypeStruct((M, N), out_dtype),
        grid_spec=pltpu.PrefetchScalarGridSpec(
            num_scalar_prefetch=0,
            grid=grid,
            in_specs=[
                pl.BlockSpec((tile, K), lambda i: (i, 0)),  # row tile of x
                pl.BlockSpec((K, N), lambda i: (0, 0)),     # full weight, resident
                pl.BlockSpec((1, N), lambda i: (0, 0)),     # bias row, resident
            ],
            out_specs=pl.BlockSpec((tile, N), lambda i: (i, 0)),
        ),
        compiler_params=pltpu.CompilerParams(
            # Rows are independent: shard across both TensorCores on v7x.
            dimension_semantics=("parallel",),
        ),
        cost_estimate=cost,
    )(x2d, w, bias2d)

    return out.reshape(*orig_shape[:-1], N)


if __name__ == "__main__":
    input_dim = 128
    bottleneck_dim = 256
    batch, n_keypoints = 2, 8  # SIFT descriptors: (B, N, 128)

    key = jax.random.PRNGKey(0)
    kx, kw, kb = jax.random.split(key, 3)

    x = jax.random.normal(kx, (batch, n_keypoints, input_dim), dtype=jnp.float32)
    # Deterministic init mimicking torch.nn.Linear default (uniform +-1/sqrt(fan_in)).
    bound = 1.0 / (input_dim ** 0.5)
    weight = jax.random.uniform(kw, (bottleneck_dim, input_dim),
                                minval=-bound, maxval=bound, dtype=jnp.float32)
    bias = jax.random.uniform(kb, (bottleneck_dim,),
                              minval=-bound, maxval=bound, dtype=jnp.float32)
    weight_t = weight.T  # (input_dim, bottleneck_dim)

    ref = x @ weight_t + bias

    # 1) Default bf16 fast path (f32 accumulation), small M -> 2 grid steps.
    out_bf16 = sift_encoder_forward(x, weight_t, bias)
    jax.block_until_ready(out_bf16)
    assert out_bf16.shape == (batch, n_keypoints, bottleneck_dim)
    assert out_bf16.dtype == jnp.float32  # out_dtype defaults to x.dtype
    assert jnp.allclose(out_bf16, ref, atol=2e-2, rtol=2e-2)

    # 2) f32 parity path (precision=HIGHEST): matches torch fp32 tightly.
    out_f32 = sift_encoder_forward(x, weight_t, bias, compute_dtype=jnp.float32)
    jax.block_until_ready(out_f32)
    assert jnp.allclose(out_f32, ref, atol=1e-5, rtol=1e-5)

    # 3) Larger, non-tile-divisible M exercises even-split tiling + the ragged
    #    last block (no wrapper pad/slice).
    x_big = jax.random.normal(kx, (3, 350, input_dim), dtype=jnp.float32)
    out_big = sift_encoder_forward(x_big, weight_t, bias)
    jax.block_until_ready(out_big)
    ref_big = x_big @ weight_t + bias
    assert out_big.shape == (3, 350, bottleneck_dim)
    assert jnp.allclose(out_big, ref_big, atol=2e-2, rtol=2e-2)

    print("KERNEL_OK")
</pallas_src>

<mosaic_0001>
module attributes {stable_mosaic.version = 11 : i64} {
  func.func @_linear_kernel(%arg0: i32, %arg1: memref<8x128xbf16, #tpu.memory_space<vmem>>, %arg2: memref<128x256xbf16, #tpu.memory_space<vmem>>, %arg3: memref<1x256xf32, #tpu.memory_space<vmem>>, %arg4: memref<8x256xf32, #tpu.memory_space<vmem>>) attributes {dimension_semantics = [#tpu.dimension_semantics<parallel>], iteration_bounds = array<i64: 2>, scalar_prefetch = 0 : i64, scratch_operands = 0 : i64, tpu.core_type = #tpu.core_type<tc>, window_params = [{transform_indices = @transform_0, window_bounds = array<i64: 8, 128>}, {pipeline_mode = #tpu.pipeline_mode<synchronous>, transform_indices = @transform_1, window_bounds = array<i64: 128, 256>}, {pipeline_mode = #tpu.pipeline_mode<synchronous>, transform_indices = @transform_2, window_bounds = array<i64: 1, 256>}, {transform_indices = @transform_3, window_bounds = array<i64: 8, 256>}]} {
    %c0 = arith.constant 0 : index
    %c0_0 = arith.constant 0 : index
    %0 = vector.load %arg1[%c0, %c0_0] : memref<8x128xbf16, #tpu.memory_space<vmem>>, vector<8x128xbf16>
    %c0_1 = arith.constant 0 : index
    %c0_2 = arith.constant 0 : index
    %1 = vector.load %arg2[%c0_1, %c0_2] : memref<128x256xbf16, #tpu.memory_space<vmem>>, vector<128x256xbf16>
    %cst = arith.constant dense<0.000000e+00> : vector<8x256xf32>
    %2 = tpu.matmul %0, %1, %cst {dimension_numbers = #tpu.dot_dimension_numbers<[1], [0], [0], [1], [0, 0, 1, 1], [], []>} : vector<8x128xbf16>, vector<128x256xbf16>, vector<8x256xf32> -> vector<8x256xf32>
    %c0_3 = arith.constant 0 : index
    %c0_4 = arith.constant 0 : index
    %3 = vector.load %arg3[%c0_3, %c0_4] : memref<1x256xf32, #tpu.memory_space<vmem>>, vector<1x256xf32>
    %4 = vector.broadcast %3 : vector<1x256xf32> to vector<8x256xf32>
    %5 = arith.addf %2, %4 : vector<8x256xf32>
    %c0_5 = arith.constant 0 : index
    %c0_6 = arith.constant 0 : index
    %6 = vector.load %arg4[%c0_5, %c0_6] : memref<8x256xf32, #tpu.memory_space<vmem>>, vector<8x256xf32>
    tpu.vector_store %arg4[%c0_5, %c0_6], %5 {strides = array<i32>} : memref<8x256xf32, #tpu.memory_space<vmem>>, vector<8x256xf32>,
    return
  }
  func.func @transform_0(%arg0: i32) -> (i32, i32) {
    %c0_i32 = arith.constant 0 : i32
    %c0_i32_0 = arith.constant 0 : i32
    return %arg0, %c0_i32 : i32, i32
  }
  func.func @transform_1(%arg0: i32) -> (i32, i32) {
    %c0_i32 = arith.constant 0 : i32
    %c0_i32_0 = arith.constant 0 : i32
    %c0_i32_1 = arith.constant 0 : i32
    return %c0_i32, %c0_i32_0 : i32, i32
  }
  func.func @transform_2(%arg0: i32) -> (i32, i32) {
    %c0_i32 = arith.constant 0 : i32
    %c0_i32_0 = arith.constant 0 : i32
    %c0_i32_1 = arith.constant 0 : i32
    return %c0_i32, %c0_i32_0 : i32, i32
  }
  func.func @transform_3(%arg0: i32) -> (i32, i32) {
    %c0_i32 = arith.constant 0 : i32
    %c0_i32_0 = arith.constant 0 : i32
    return %arg0, %c0_i32 : i32, i32
  }
}

</mosaic_0001>

<llo_original>
// kernel: tpu_custom_call.1
$region0: #{tpu_custom_call.1}
  #allocation0 [shape = 'u32[]', space=smem, size = 0x4, offset = 0x4, fixed_abs, tag = 'smem constant byte address 0x4 - core index']
  #allocation1 [shape = 'u32[72,128]{1,0:T(1,128)}', space=vmem, size = 0x9000, scoped, tag = 'internal scratch']
  %s0 = inlined_call_operand.hbm [shape: bf16[16,128], index: 0, kind: input, shape index: {}]
  %s1 = inlined_call_operand.hbm [shape: bf16[128,256], index: 1, kind: input, shape index: {}]
  %s2 = inlined_call_operand.hbm [shape: f32[1,256], index: 2, kind: input, shape index: {}]
  %s3 = inlined_call_operand.hbm [shape: f32[16,256], index: 3, kind: output, shape index: {}]
  %s4 = sld [smem:[#allocation0]]
  $region57: #{tpu_custom_call.1} parent=0
    _
  %s6 = ssub.s32 1, %s4
  %s7 = scalar_select 0, %s6, %s4
  $region1: #{tpu_custom_call.1} parent=0
    #allocation2 [shape = 'u8[4096]{0}', space=vmem, size = 0x1000, scoped, tag = 'input window, operand 0']
    #allocation3 [shape = 's32[2]{0}', space=sflag, size = 0x8, scoped, tag = 'scoped memory for tpu_custom_call.1']
    #allocation4 [shape = 's32[2]{0}', space=sflag, size = 0x8, scoped, tag = 'scoped memory for tpu_custom_call.1']
    #allocation5 [shape = 'u8[65536]{0}', space=vmem, size = 0x10000, scoped, tag = 'input window, operand 1, single buffered']
    #allocation6 [shape = 's32[1]{0}', space=sflag, size = 0x4, scoped, tag = 'scoped memory for tpu_custom_call.1']
    #allocation7 [shape = 'u8[1024]{0}', space=vmem, size = 0x400, scoped, tag = 'input window, operand 2, single buffered']
    #allocation8 [shape = 'u8[16384]{0}', space=vmem, size = 0x4000, scoped, tag = 'output window, operand 0']
    %8 = vsyncpa [#allocation3], 0
    %s9 = scalar_lea.sflag [#allocation3], 1
    %10 = vsyncpa %s9, 0
    %11 = vsyncpa [#allocation6], 0
    %12 = vsyncpa [#allocation4], 0
    %s13 = scalar_lea.sflag [#allocation4], 1
    %14 = vsyncpa %s13, 0
    loop: start=0, step=1, limit=4
    $region2: #{tpu_custom_call.1} parent=1 // loop_pre_header
      _
    $region3: #{tpu_custom_call.1} parent=1 // loop_header
      %s16 = sphi 0, %s20
      %p17 = scmp.ge.s32.totalorder %s16, 4
      %s26 = sphi 0, %s28
      %s29 = sphi 0, %s26
      %s30 = sphi 0, %s29
      %s46 = sphi 0, %s30
      %s50 = sphi 0, %s50
      %s52 = sphi 0, %s50
      %s53 = sphi 0, %s52
      %s67 = sphi 0, %s53
      %s71 = sphi 0, %s71
      %s73 = sphi 0, %s71
      %s74 = sphi 0, %s73
      %s88 = sphi 0, %s74
      %s94 = sphi 0, %s96
      %s97 = sphi 0, %s94
      %s98 = sphi 0, %s97
      %s114 = sphi 0, %s98
    $region4: #{tpu_custom_call.1} parent=1 // loop_header_branch
      %19 = sbr.rel (%p17) target = $region8
    $region5: #{tpu_custom_call.1} parent=1 // loop_body
      %s21 = ssub.s32 %s16, 1
      %s22 = ssub.s32 %s16, 2
      %s23 = sadd.s32 %s16, 1
      %s24 = ssub.s32 %s16, %s23
      %p25 = scmp.eq.s32.totalorder %s24, 0
      %s27 = sadd.s32 %s26, 1
      %s28 = scalar_select %p25, %s26, %s27
      %p31 = pneg %p25
      %p32 = scmp.eq.s32.totalorder %s16, 1
      %p33 = por %p31, %p32
      %p34 = scmp.ne.s32.totalorder %s26, %s29
      %p35 = scmp.eq.s32.totalorder %s16, 0
      %p36 = por %p34, %p35
      %p37 = scmp.ne.s32.totalorder %s26, %s29
      %p38 = scmp.eq.s32.totalorder %s21, 1
      %p39 = por %p37, %p38
      %p40 = scmp.ne.s32.totalorder %s29, %s30
      %p41 = scmp.eq.s32.totalorder %s21, 0
      %p42 = por %p40, %p41
      %p43 = scmp.ne.s32.totalorder %s29, %s30
      %p44 = scmp.eq.s32.totalorder %s22, 1
      %p45 = por %p43, %p44
      %p47 = scmp.ne.s32.totalorder %s30, %s46
      %p48 = scmp.eq.s32.totalorder %s22, 0
      %p49 = por %p47, %p48
      %s51 = sadd.s32 %s50, 1
      %p54 = scmp.eq.s32.totalorder %s16, 1
      %p55 = scmp.ne.s32.totalorder %s50, %s52
      %p56 = scmp.eq.s32.totalorder %s16, 0
      %p57 = por %p55, %p56
      %p58 = scmp.ne.s32.totalorder %s50, %s52
      %p59 = scmp.eq.s32.totalorder %s21, 1
      %p60 = por %p58, %p59
      %p61 = scmp.ne.s32.totalorder %s52, %s53
      %p62 = scmp.eq.s32.totalorder %s21, 0
      %p63 = por %p61, %p62
      %p64 = scmp.ne.s32.totalorder %s52, %s53
      %p65 = scmp.eq.s32.totalorder %s22, 1
      %p66 = por %p64, %p65
      %p68 = scmp.ne.s32.totalorder %s53, %s67
      %p69 = scmp.eq.s32.totalorder %s22, 0
      %p70 = por %p68, %p69
      %s72 = sadd.s32 %s71, 1
      %p75 = scmp.eq.s32.totalorder %s16, 1
      %p76 = scmp.ne.s32.totalorder %s71, %s73
      %p77 = scmp.eq.s32.totalorder %s16, 0
      %p78 = por %p76, %p77
      %p79 = scmp.ne.s32.totalorder %s71, %s73
      %p80 = scmp.eq.s32.totalorder %s21, 1
      %p81 = por %p79, %p80
      %p82 = scmp.ne.s32.totalorder %s73, %s74
      %p83 = scmp.eq.s32.totalorder %s21, 0
      %p84 = por %p82, %p83
      %p85 = scmp.ne.s32.totalorder %s73, %s74
      %p86 = scmp.eq.s32.totalorder %s22, 1
      %p87 = por %p85, %p86
      %p89 = scmp.ne.s32.totalorder %s74, %s88
      %p90 = scmp.eq.s32.totalorder %s22, 0
      %p91 = por %p89, %p90
      %s92 = ssub.s32 %s16, %s23
      %p93 = scmp.eq.s32.totalorder %s92, 0
      %s95 = sadd.s32 %s94, 1
      %s96 = scalar_select %p93, %s94, %s95
      %p99 = pneg %p93
      %p100 = scmp.eq.s32.totalorder %s16, 1
      %p101 = por %p99, %p100
      %p102 = scmp.ne.s32.totalorder %s94, %s97
      %p103 = scmp.eq.s32.totalorder %s16, 0
      %p104 = por %p102, %p103
      %p105 = scmp.ne.s32.totalorder %s94, %s97
      %p106 = scmp.eq.s32.totalorder %s21, 1
      %p107 = por %p105, %p106
      %p108 = scmp.ne.s32.totalorder %s97, %s98
      %p109 = scmp.eq.s32.totalorder %s21, 0
      %p110 = por %p108, %p109
      %p111 = scmp.ne.s32.totalorder %s97, %s98
      %p112 = scmp.eq.s32.totalorder %s22, 1
      %p113 = por %p111, %p112
      %p115 = scmp.ne.s32.totalorder %s98, %s114
      %p116 = scmp.eq.s32.totalorder %s22, 0
      %p117 = por %p115, %p116
      %p118 = scmp.le.s32.totalorder 1, %s16
      %p119 = scmp.lt.s32.totalorder %s16, 3
      %p120 = pnand %p118, %p119
      %p121 = pneg %p120
      // Predicated region
      $region9: #{tpu_custom_call.1} parent=5 // pred_check
        _
      $region10: #{tpu_custom_call.1} parent=5 // pred_check_branch
        %123 = sbr.rel (%p120) target = $region12
      $region11: #{tpu_custom_call.1} parent=5 // pred_region
        %s124 = ssub.s32 %s16, 1
        // Predicated region
        $region13: #{tpu_custom_call.1} parent=11 // pred_check
          %p125 = pneg %p63
        $region14: #{tpu_custom_call.1} parent=11 // pred_check_branch
          %127 = sbr.rel (%p125) target = $region16
        $region15: #{tpu_custom_call.1} parent=11 // pred_region
          %129 = vsyncadd [#allocation6], 0
          %s130 = sshll.u32 %s1, 4
          %s131 = int_to_ptr.hbm [resolvable:$true] %s130
          %s132 = sshll.u32 [#allocation5], 4
          %s133 = int_to_ptr.vmem [resolvable:$true] %s132
          %138 = dma.hbm_to_vmem [thread:$0]  %s131, 2048, %s133, [#allocation6], 128, 128, 8
        $region16: #{tpu_custom_call.1} parent=11 // pred_fallthru
          _
        // Predicated region
        $region17: #{tpu_custom_call.1} parent=11 // pred_check
          %p139 = pneg %p84
        $region18: #{tpu_custom_call.1} parent=11 // pred_check_branch
          %141 = sbr.rel (%p139) target = $region20
        $region19: #{tpu_custom_call.1} parent=11 // pred_region
          %143 = vsyncadd [#allocation6], 0
          %s145 = sshll.u32 %s2, 4
          %s146 = int_to_ptr.hbm [resolvable:$true] %s145
          %s147 = sshll.u32 [#allocation7], 4
          %s148 = int_to_ptr.vmem [resolvable:$true] %s147
          %150 = dma.hbm_to_vmem [thread:$0]  %s146, 32, %s148, [#allocation6]
        $region20: #{tpu_custom_call.1} parent=11 // pred_fallthru
          _
      $region12: #{tpu_custom_call.1} parent=5 // pred_fallthru
        _
      %p151 = scmp.lt.s32.totalorder %s16, 2
      // Predicated region
      $region21: #{tpu_custom_call.1} parent=5 // pred_check
        %p152 = pneg %p151
      $region22: #{tpu_custom_call.1} parent=5 // pred_check_branch
        %154 = sbr.rel (%p152) target = $region24
      $region23: #{tpu_custom_call.1} parent=5 // pred_region
        // Predicated region
        $region25: #{tpu_custom_call.1} parent=23 // pred_check
          %p155 = pneg %p36
        $region26: #{tpu_custom_call.1} parent=23 // pred_check_branch
          %157 = sbr.rel (%p155) target = $region28
        $region27: #{tpu_custom_call.1} parent=23 // pred_region
          %s158 = sand.u32 %s26, 1
          %s159 = scalar_lea.sflag [#allocation3], %s158
          %s160 = sand.u32 %s26, 1
          %s161 = smul.addr %s160, 4
          %s162 = scalar_lea.vmem [#allocation2], %s161
          %164 = vsyncadd %s159, 0
          %s165 = smul.addr %s16, 4
          %s166 = scalar_lea.hbm %s0, %s165
          %s168 = sshll.u32 %s166, 4
          %s169 = int_to_ptr.hbm [resolvable:$true] %s168
          %s170 = sshll.u32 %s162, 4
          %s171 = int_to_ptr.vmem [resolvable:$true] %s170
          %173 = dma.hbm_to_vmem [thread:$0]  %s169, 64, %s171, %s159
        $region28: #{tpu_custom_call.1} parent=23 // pred_fallthru
          _
      $region24: #{tpu_custom_call.1} parent=5 // pred_fallthru
        _
      %p174 = scmp.le.s32.totalorder 1, %s16
      %p175 = scmp.lt.s32.totalorder %s16, 3
      %p176 = pnand %p174, %p175
      %p177 = pneg %p176
      // Predicated region
      $region29: #{tpu_custom_call.1} parent=5 // pred_check
        _
      $region30: #{tpu_custom_call.1} parent=5 // pred_check_branch
        %179 = sbr.rel (%p176) target = $region32
      $region31: #{tpu_custom_call.1} parent=5 // pred_region
        %s180 = ssub.s32 %s16, 1
        %s181 = sand.u32 %s29, 1
        %s182 = scalar_lea.sflag [#allocation3], %s181
        %s183 = sand.u32 %s29, 1
        %s184 = smul.addr %s183, 4
        %s185 = scalar_lea.vmem [#allocation2], %s184
        // Predicated region
        $region33: #{tpu_custom_call.1} parent=31 // pred_check
          %p186 = pneg %p42
        $region34: #{tpu_custom_call.1} parent=31 // pred_check_branch
          %188 = sbr.rel (%p186) target = $region36
        $region35: #{tpu_custom_call.1} parent=31 // pred_region
          %190 = dma.done %s182, 64
        $region36: #{tpu_custom_call.1} parent=31 // pred_fallthru
          _
        // Predicated region
        $region37: #{tpu_custom_call.1} parent=31 // pred_check
          %p191 = pneg %p63
        $region38: #{tpu_custom_call.1} parent=31 // pred_check_branch
          %193 = sbr.rel (%p191) target = $region40
        $region39: #{tpu_custom_call.1} parent=31 // pred_region
          %195 = dma.done [#allocation6], 2048
        $region40: #{tpu_custom_call.1} parent=31 // pred_fallthru
          _
        // Predicated region
        $region41: #{tpu_custom_call.1} parent=31 // pred_check
          %p196 = pneg %p84
        $region42: #{tpu_custom_call.1} parent=31 // pred_check_branch
          %198 = sbr.rel (%p196) target = $region44
        $region43: #{tpu_custom_call.1} parent=31 // pred_region
          %200 = dma.done [#allocation6], 32
        $region44: #{tpu_custom_call.1} parent=31 // pred_fallthru
          _
        %s201 = sand.u32 %s29, 1
        %s202 = scalar_lea.sflag [#allocation3], %s201
        %s203 = sand.u32 %s29, 1
        %s204 = smul.addr %s203, 4
        %s205 = scalar_lea.vmem [#allocation2], %s204
        %p206 = pneg %p42
        %p207 = pneg %p39
        %p208 = pneg %p63
        %p209 = pneg %p60
        %p210 = pneg %p84
        %p211 = pneg %p81
        %p212 = pneg %p110
        %p213 = pneg %p107
        %s214 = sand.u32 %s97, 1
        %s215 = scalar_lea.sflag [#allocation4], %s214
        %s216 = sand.u32 %s97, 1
        %s217 = smul.addr %s216, 16
        %s218 = scalar_lea.vmem [#allocation8], %s217
        %v219 = vld [vmem:[%s185] sm:$0xf]
        %v220 = vld [vmem:[#allocation5] sm:$0xff]
        %v221 = vld [vmem:[#allocation5 + $0x8] sm:$0xff]
        %v222 = vld [vmem:[#allocation5 + $0x10] sm:$0xff]
        %v223 = vld [vmem:[#allocation5 + $0x18] sm:$0xff]
        %v224 = vld [vmem:[#allocation5 + $0x20] sm:$0xff]
        %v225 = vld [vmem:[#allocation5 + $0x28] sm:$0xff]
        %v226 = vld [vmem:[#allocation5 + $0x30] sm:$0xff]
        %v227 = vld [vmem:[#allocation5 + $0x38] sm:$0xff]
        %v228 = vld [vmem:[#allocation5 + $0x40] sm:$0xff]
        %v229 = vld [vmem:[#allocation5 + $0x48] sm:$0xff]
        %v230 = vld [vmem:[#allocation5 + $0x50] sm:$0xff]
        %v231 = vld [vmem:[#allocation5 + $0x58] sm:$0xff]
        %v232 = vld [vmem:[#allocation5 + $0x60] sm:$0xff]
        %v233 = vld [vmem:[#allocation5 + $0x68] sm:$0xff]
        %v234 = vld [vmem:[#allocation5 + $0x70] sm:$0xff]
        %v235 = vld [vmem:[#allocation5 + $0x78] sm:$0xff]
        %v236 = vld [vmem:[#allocation7] sm:$0x3]
        %v238 = vperm.slane %v236, 0
        %v239 = vperm.slane %v236, 1
        %v258 = vunpack.c.l.b16 %v220
        %v259 = vunpack.c.h.b16 %v220
        %v260 = vunpack.c.l.b16 %v221
        %v261 = vunpack.c.h.b16 %v221
        %v262 = vunpack.c.l.b16 %v222
        %v263 = vunpack.c.h.b16 %v222
        %v264 = vunpack.c.l.b16 %v223
        %v265 = vunpack.c.h.b16 %v223
        %v266 = vunpack.c.l.b16 %v224
        %v267 = vunpack.c.h.b16 %v224
        %v268 = vunpack.c.l.b16 %v225
        %v269 = vunpack.c.h.b16 %v225
        %v270 = vunpack.c.l.b16 %v226
        %v271 = vunpack.c.h.b16 %v226
        %v272 = vunpack.c.l.b16 %v227
        %v273 = vunpack.c.h.b16 %v227
        %v274 = vunpack.c.l.b16 %v228
        %v275 = vunpack.c.h.b16 %v228
        %v276 = vunpack.c.l.b16 %v229
        %v277 = vunpack.c.h.b16 %v229
        %v278 = vunpack.c.l.b16 %v230
        %v279 = vunpack.c.h.b16 %v230
        %v280 = vunpack.c.l.b16 %v231
        %v281 = vunpack.c.h.b16 %v231
        %v282 = vunpack.c.l.b16 %v232
        %v283 = vunpack.c.h.b16 %v232
        %v284 = vunpack.c.l.b16 %v233
        %v285 = vunpack.c.h.b16 %v233
        %v286 = vunpack.c.l.b16 %v234
        %v287 = vunpack.c.h.b16 %v234
        %v288 = vunpack.c.l.b16 %v235
        %v289 = vunpack.c.h.b16 %v235
        %v290 = vpack.c.b16 %v260, %v258
        %v291 = vpack.c.b16 %v261, %v259
        %v292 = vpack.c.b16 %v264, %v262
        %v293 = vpack.c.b16 %v265, %v263
        %v294 = vpack.c.b16 %v268, %v266
        %v295 = vpack.c.b16 %v269, %v267
        %v296 = vpack.c.b16 %v272, %v270
        %v297 = vpack.c.b16 %v273, %v271
        %v298 = vpack.c.b16 %v276, %v274
        %v299 = vpack.c.b16 %v277, %v275
        %v300 = vpack.c.b16 %v280, %v278
        %v301 = vpack.c.b16 %v281, %v279
        %v302 = vpack.c.b16 %v284, %v282
        %v303 = vpack.c.b16 %v285, %v283
        %v304 = vpack.c.b16 %v288, %v286
        %v305 = vpack.c.b16 %v289, %v287
        %322 = vmatpush.bf16.msra.mxu0 %v304
        %323 = vmatpush.bf16.msra.mxu0 %v302
        %324 = vmatpush.bf16.msra.mxu0 %v300
        %325 = vmatpush.bf16.msra.mxu0 %v298
        %326 = vmatpush.bf16.msra.mxu0 %v296
        %327 = vmatpush.bf16.msra.mxu0 %v294
        %328 = vmatpush.bf16.msra.mxu0 %v292
        %329 = vmatpush.bf16.msra.mxu0 %v290
        %330 = vmatmul.bf16.gmra.mxu0 %v219
        %v331 = vpop.f32.mrf.mxu0
        %v332 = vadd.f32 %v238, %v331
        %v333 = vpop.f32.mrf.mxu0
        %334 = vdwg.mxu0
        %335 = vmatpush.bf16.msra.mxu0 %v305
        %336 = vmatpush.bf16.msra.mxu0 %v303
        %337 = vmatpush.bf16.msra.mxu0 %v301
        %338 = vmatpush.bf16.msra.mxu0 %v299
        %339 = vmatpush.bf16.msra.mxu0 %v297
        %340 = vmatpush.bf16.msra.mxu0 %v295
        %341 = vmatpush.bf16.msra.mxu0 %v293
        %342 = vmatpush.bf16.msra.mxu0 %v291
        %343 = vmatmul.bf16.gmra.mxu0 %v219
        %v344 = vpop.f32.mrf.mxu0
        %v345 = vadd.f32 %v239, %v344
        %v346 = vpop.f32.mrf.mxu0
        %347 = vdwg.mxu0
        %348 = vst [vmem:[%s218] sm:$0xff] %v332
        %349 = vst [vmem:[%s218 + $0x8] sm:$0xff] %v345
        %s350 = sand.u32 %s97, 1
        %s351 = scalar_lea.sflag [#allocation4], %s350
        %s352 = sand.u32 %s97, 1
        %s353 = smul.addr %s352, 16
        %s354 = scalar_lea.vmem [#allocation8], %s353
        // Predicated region
        $region45: #{tpu_custom_call.1} parent=31 // pred_check
          %p355 = pneg %p107
        $region46: #{tpu_custom_call.1} parent=31 // pred_check_branch
          %357 = sbr.rel (%p355) target = $region48
        $region47: #{tpu_custom_call.1} parent=31 // pred_region
          %359 = vsyncadd %s351, 0
          %s360 = smul.addr %s21, 2
          %s361 = smul.addr %s360, 8
          %s362 = scalar_lea.hbm %s3, %s361
          %s364 = sshll.u32 %s354, 4
          %s365 = int_to_ptr.vmem [resolvable:$true] %s364
          %s366 = sshll.u32 %s362, 4
          %s367 = int_to_ptr.hbm [resolvable:$true] %s366
          %369 = dma.vmem_to_hbm [thread:$0]  %s365, 256, %s367, %s351
        $region48: #{tpu_custom_call.1} parent=31 // pred_fallthru
          _
      $region32: #{tpu_custom_call.1} parent=5 // pred_fallthru
        _
      %p370 = scmp.le.s32.totalorder 2, %s16
      // Predicated region
      $region49: #{tpu_custom_call.1} parent=5 // pred_check
        %p371 = pneg %p370
      $region50: #{tpu_custom_call.1} parent=5 // pred_check_branch
        %373 = sbr.rel (%p371) target = $region52
      $region51: #{tpu_custom_call.1} parent=5 // pred_region
        %s374 = ssub.s32 %s16, 2
        // Predicated region
        $region53: #{tpu_custom_call.1} parent=51 // pred_check
          %p375 = pneg %p113
        $region54: #{tpu_custom_call.1} parent=51 // pred_check_branch
          %377 = sbr.rel (%p375) target = $region56
        $region55: #{tpu_custom_call.1} parent=51 // pred_region
          %s378 = sand.u32 %s98, 1
          %s379 = scalar_lea.sflag [#allocation4], %s378
          %s380 = sand.u32 %s98, 1
          %s381 = smul.addr %s380, 16
          %s382 = scalar_lea.vmem [#allocation8], %s381
          %384 = dma.done %s379, 256
        $region56: #{tpu_custom_call.1} parent=51 // pred_fallthru
          _
      $region52: #{tpu_custom_call.1} parent=5 // pred_fallthru
        _
    $region6: #{tpu_custom_call.1} parent=1 // loop_footer
      %s20 = sadd.s32 1, %s16
    $region7: #{tpu_custom_call.1} parent=1 // loop_footer_branch
      %15 = sbr.rel target = $region3
    $region8: #{tpu_custom_call.1} parent=1 // loop_exit
      _
    %385 = vsyncpa [#allocation3], 1
    %s386 = scalar_lea.sflag [#allocation3], 1
    %387 = vsyncpa %s386, 1
    %388 = vsyncpa [#allocation6], 1
    %389 = vsyncpa [#allocation4], 1
    %s390 = scalar_lea.sflag [#allocation4], 1
    %391 = vsyncpa %s390, 1

</llo_original>
